<compile_context>
chip_gen: v7x
topology: tpu7x:2x2x1
jax: 0.10.0
libtpu: 0.0.40
codegen_flags: <defaults>
</compile_context>

<pallas_src>
import functools

import numpy as np

import jax
import jax.numpy as jnp
from jax.experimental import pallas as pl
from jax.experimental.pallas import tpu as pltpu


def _bilinear_matrix_np(in_size: int, out_size: int) -> np.ndarray:
    """Interpolation matrix (out_size, in_size) matching PyTorch bilinear,
    align_corners=False (nn.Upsample default).  Built with numpy so it is a
    compile-time constant (no runtime HBM round trip)."""
    scale = np.float32(in_size / out_size)
    dst = np.arange(out_size, dtype=np.float32)
    src = np.maximum((dst + np.float32(0.5)) * scale - np.float32(0.5),
                     np.float32(0.0))
    i0 = np.minimum(np.floor(src).astype(np.int64), in_size - 1)
    i1 = np.minimum(i0 + 1, in_size - 1)
    frac = (src - i0.astype(np.float32)).astype(np.float32)
    m = np.zeros((out_size, in_size), dtype=np.float32)
    rows = np.arange(out_size)
    m[rows, i0] += np.float32(1.0) - frac
    m[rows, i1] += frac
    return m


def _dsv_kernel(x_ref, ay_ref, axt_ref, w_ref, b_ref, o_ref, *,
                batch, c_in, c_out, h, out_h):
    # x_ref:   (B*C_in*H, W)          VMEM, rows = (b, c, h), lanes = w
    # ay_ref:  (out_H, H)             VMEM  (baked constant)
    # axt_ref: (W, out_W)             VMEM  (baked constant)
    # w_ref:   (C_out*C_in,)          SMEM scalars (flattened 1x1 conv weight)
    # b_ref:   (C_out,)               SMEM scalars (conv bias)
    # o_ref:   (B*C_out*out_H, out_W) VMEM, rows = (b, o, oh), lanes = ow
    ay = ay_ref[...]                       # (out_H, H)
    axt = axt_ref[...]                     # (W, out_W)

    # Unrolled over (batch, out_channel): 4 iterations at the test size.
    for b in range(batch):
        for o in range(c_out):
            # 1x1 conv on the VPU: weighted sum of C_in tile-aligned (H, W)
            # slabs plus bias (exactly the module's conv, bias added BEFORE
            # the upsample -- no reliance on interpolation weights summing
            # to 1, though they do).
            base = b * c_in * h
            conv = x_ref[base:base + h, :] * w_ref[o * c_in]
            for c in range(1, c_in):
                conv = conv + (x_ref[base + c * h:base + (c + 1) * h, :]
                               * w_ref[o * c_in + c])
            conv = conv + b_ref[o]                         # (H, W)

            # Separable bilinear upsample: two tiny MXU matmuls.
            t = jnp.dot(conv, axt, preferred_element_type=jnp.float32)   # (H, out_W)
            ob = jnp.dot(ay, t, preferred_element_type=jnp.float32)      # (out_H, out_W)

            r0 = (b * c_out + o) * out_h                   # multiple of out_H (aligned)
            o_ref[r0:r0 + out_h, :] = ob.astype(o_ref.dtype)


@functools.partial(jax.jit, static_argnames=("out_h", "out_w"))
def unet_dsv3(x, weight, bias, out_h, out_w):
    """x: (B, C_in, H, W) f32; weight: (C_out, C_in); bias: (C_out,)."""
    b, c_in, h, w = x.shape
    c_out = weight.shape[0]

    # Trace-time (compile-time constant) interpolation matrices.
    ay = jnp.asarray(_bilinear_matrix_np(h, out_h))        # (out_H, H)
    axt = jnp.asarray(_bilinear_matrix_np(w, out_w).T)     # (W, out_W)

    x_rows = x.reshape(b * c_in * h, w)                    # free row-major reshape
    w_flat = weight.reshape(c_out * c_in)

    out_rows = pl.pallas_call(
        functools.partial(_dsv_kernel, batch=b, c_in=c_in, c_out=c_out,
                          h=h, out_h=out_h),
        out_shape=jax.ShapeDtypeStruct((b * c_out * out_h, out_w), x.dtype),
        in_specs=[
            pl.BlockSpec(memory_space=pltpu.MemorySpace.VMEM),   # x_rows
            pl.BlockSpec(memory_space=pltpu.MemorySpace.VMEM),   # Ay
            pl.BlockSpec(memory_space=pltpu.MemorySpace.VMEM),   # Ax^T
            pl.BlockSpec(memory_space=pltpu.MemorySpace.SMEM),   # weight scalars
            pl.BlockSpec(memory_space=pltpu.MemorySpace.SMEM),   # bias scalars
        ],
        out_specs=pl.BlockSpec(memory_space=pltpu.MemorySpace.VMEM),
    )(x_rows, ay, axt, w_flat, bias)

    return out_rows.reshape(b, c_out, out_h, out_w)


def unet_dsv3_reference(x, weight, bias, out_h, out_w):
    """Pure-JAX reference with identical math (1x1 conv + bilinear resize)."""
    _, _, h, w = x.shape
    conv = jnp.einsum("oc,bchw->bohw", weight, x) + bias[None, :, None, None]
    ay = jnp.asarray(_bilinear_matrix_np(h, out_h))
    ax = jnp.asarray(_bilinear_matrix_np(w, out_w))
    tmp = jnp.einsum("bchw,kw->bchk", conv, ax)
    return jnp.einsum("oh,bchk->bcok", ay, tmp)


if __name__ == "__main__":
    # Module config: in_size=4, out_size=2, Upsample(size=(32, 32))
    B, C_IN, H, W = 2, 4, 16, 16
    C_OUT = 2
    OUT_H, OUT_W = 32, 32

    key = jax.random.PRNGKey(0)
    kx, kw, kb = jax.random.split(key, 3)
    x = jax.random.normal(kx, (B, C_IN, H, W), dtype=jnp.float32)
    # Conv2d(in_size, out_size, kernel_size=1): weight (C_out, C_in, 1, 1)
    # stored here as (C_out, C_in); bias (C_out,)
    weight = jax.random.normal(kw, (C_OUT, C_IN), dtype=jnp.float32) * 0.1
    bias = jax.random.normal(kb, (C_OUT,), dtype=jnp.float32) * 0.1

    out = unet_dsv3(x, weight, bias, OUT_H, OUT_W)
    out = jax.block_until_ready(out)

    ref = unet_dsv3_reference(x, weight, bias, OUT_H, OUT_W)
    assert out.shape == (B, C_OUT, OUT_H, OUT_W), out.shape
    assert jnp.allclose(out, ref, atol=1e-5, rtol=1e-5), (
        float(jnp.max(jnp.abs(out - ref))))

    print("KERNEL_OK")
</pallas_src>

<mosaic_0001>
module attributes {stable_mosaic.version = 11 : i64} {
  func.func @_dsv_kernel(%arg0: memref<128x16xf32, #tpu.memory_space<vmem>>, %arg1: memref<32x16xf32, #tpu.memory_space<vmem>>, %arg2: memref<16x32xf32, #tpu.memory_space<vmem>>, %arg3: memref<8xf32, #tpu.memory_space<smem>>, %arg4: memref<2xf32, #tpu.memory_space<smem>>, %arg5: memref<128x32xf32, #tpu.memory_space<vmem>>) attributes {dimension_semantics = [], scalar_prefetch = 0 : i64, scratch_operands = 0 : i64, tpu.core_type = #tpu.core_type<tc>} {
    %c0 = arith.constant 0 : index
    %c0_0 = arith.constant 0 : index
    %0 = vector.load %arg1[%c0, %c0_0] : memref<32x16xf32, #tpu.memory_space<vmem>>, vector<32x16xf32>
    %c0_1 = arith.constant 0 : index
    %c0_2 = arith.constant 0 : index
    %1 = vector.load %arg2[%c0_1, %c0_2] : memref<16x32xf32, #tpu.memory_space<vmem>>, vector<16x32xf32>
    %c0_3 = arith.constant 0 : index
    %c0_4 = arith.constant 0 : index
    %2 = vector.load %arg0[%c0_3, %c0_4] : memref<128x16xf32, #tpu.memory_space<vmem>>, vector<16x16xf32>
    %c0_5 = arith.constant 0 : index
    %3 = memref.load %arg3[%c0_5] : memref<8xf32, #tpu.memory_space<smem>>
    %4 = vector.broadcast %3 : f32 to vector<16x16xf32>
    %5 = arith.mulf %2, %4 : vector<16x16xf32>
    %c16 = arith.constant 16 : index
    %c0_6 = arith.constant 0 : index
    %6 = vector.load %arg0[%c16, %c0_6] : memref<128x16xf32, #tpu.memory_space<vmem>>, vector<16x16xf32>
    %c1 = arith.constant 1 : index
    %7 = memref.load %arg3[%c1] : memref<8xf32, #tpu.memory_space<smem>>
    %8 = vector.broadcast %7 : f32 to vector<16x16xf32>
    %9 = arith.mulf %6, %8 : vector<16x16xf32>
    %10 = arith.addf %5, %9 : vector<16x16xf32>
    %c32 = arith.constant 32 : index
    %c0_7 = arith.constant 0 : index
    %11 = vector.load %arg0[%c32, %c0_7] : memref<128x16xf32, #tpu.memory_space<vmem>>, vector<16x16xf32>
    %c2 = arith.constant 2 : index
    %12 = memref.load %arg3[%c2] : memref<8xf32, #tpu.memory_space<smem>>
    %13 = vector.broadcast %12 : f32 to vector<16x16xf32>
    %14 = arith.mulf %11, %13 : vector<16x16xf32>
    %15 = arith.addf %10, %14 : vector<16x16xf32>
    %c48 = arith.constant 48 : index
    %c0_8 = arith.constant 0 : index
    %16 = vector.load %arg0[%c48, %c0_8] : memref<128x16xf32, #tpu.memory_space<vmem>>, vector<16x16xf32>
    %c3 = arith.constant 3 : index
    %17 = memref.load %arg3[%c3] : memref<8xf32, #tpu.memory_space<smem>>
    %18 = vector.broadcast %17 : f32 to vector<16x16xf32>
    %19 = arith.mulf %16, %18 : vector<16x16xf32>
    %20 = arith.addf %15, %19 : vector<16x16xf32>
    %c0_9 = arith.constant 0 : index
    %21 = memref.load %arg4[%c0_9] : memref<2xf32, #tpu.memory_space<smem>>
    %22 = vector.broadcast %21 : f32 to vector<16x16xf32>
    %23 = arith.addf %20, %22 : vector<16x16xf32>
    %cst = arith.constant dense<0.000000e+00> : vector<16x32xf32>
    %24 = tpu.matmul %23, %1, %cst {dimension_numbers = #tpu.dot_dimension_numbers<[1], [0], [0], [1], [0, 0, 1, 1], [], []>} : vector<16x16xf32>, vector<16x32xf32>, vector<16x32xf32> -> vector<16x32xf32>
    %cst_10 = arith.constant dense<0.000000e+00> : vector<32x32xf32>
    %25 = tpu.matmul %0, %24, %cst_10 {dimension_numbers = #tpu.dot_dimension_numbers<[1], [0], [0], [1], [0, 0, 1, 1], [], []>} : vector<32x16xf32>, vector<16x32xf32>, vector<32x32xf32> -> vector<32x32xf32>
    %c0_11 = arith.constant 0 : index
    %c0_12 = arith.constant 0 : index
    %26 = vector.load %arg5[%c0_11, %c0_12] : memref<128x32xf32, #tpu.memory_space<vmem>>, vector<32x32xf32>
    tpu.vector_store %arg5[%c0_11, %c0_12], %25 {strides = array<i32>} : memref<128x32xf32, #tpu.memory_space<vmem>>, vector<32x32xf32>,
    %c0_13 = arith.constant 0 : index
    %c0_14 = arith.constant 0 : index
    %27 = vector.load %arg0[%c0_13, %c0_14] : memref<128x16xf32, #tpu.memory_space<vmem>>, vector<16x16xf32>
    %c4 = arith.constant 4 : index
    %28 = memref.load %arg3[%c4] : memref<8xf32, #tpu.memory_space<smem>>
    %29 = vector.broadcast %28 : f32 to vector<16x16xf32>
    %30 = arith.mulf %27, %29 : vector<16x16xf32>
    %c16_15 = arith.constant 16 : index
    %c0_16 = arith.constant 0 : index
    %31 = vector.load %arg0[%c16_15, %c0_16] : memref<128x16xf32, #tpu.memory_space<vmem>>, vector<16x16xf32>
    %c5 = arith.constant 5 : index
    %32 = memref.load %arg3[%c5] : memref<8xf32, #tpu.memory_space<smem>>
    %33 = vector.broadcast %32 : f32 to vector<16x16xf32>
    %34 = arith.mulf %31, %33 : vector<16x16xf32>
    %35 = arith.addf %30, %34 : vector<16x16xf32>
    %c32_17 = arith.constant 32 : index
    %c0_18 = arith.constant 0 : index
    %36 = vector.load %arg0[%c32_17, %c0_18] : memref<128x16xf32, #tpu.memory_space<vmem>>, vector<16x16xf32>
    %c6 = arith.constant 6 : index
    %37 = memref.load %arg3[%c6] : memref<8xf32, #tpu.memory_space<smem>>
    %38 = vector.broadcast %37 : f32 to vector<16x16xf32>
    %39 = arith.mulf %36, %38 : vector<16x16xf32>
    %40 = arith.addf %35, %39 : vector<16x16xf32>
    %c48_19 = arith.constant 48 : index
    %c0_20 = arith.constant 0 : index
    %41 = vector.load %arg0[%c48_19, %c0_20] : memref<128x16xf32, #tpu.memory_space<vmem>>, vector<16x16xf32>
    %c7 = arith.constant 7 : index
    %42 = memref.load %arg3[%c7] : memref<8xf32, #tpu.memory_space<smem>>
    %43 = vector.broadcast %42 : f32 to vector<16x16xf32>
    %44 = arith.mulf %41, %43 : vector<16x16xf32>
    %45 = arith.addf %40, %44 : vector<16x16xf32>
    %c1_21 = arith.constant 1 : index
    %46 = memref.load %arg4[%c1_21] : memref<2xf32, #tpu.memory_space<smem>>
    %47 = vector.broadcast %46 : f32 to vector<16x16xf32>
    %48 = arith.addf %45, %47 : vector<16x16xf32>
    %cst_22 = arith.constant dense<0.000000e+00> : vector<16x32xf32>
    %49 = tpu.matmul %48, %1, %cst_22 {dimension_numbers = #tpu.dot_dimension_numbers<[1], [0], [0], [1], [0, 0, 1, 1], [], []>} : vector<16x16xf32>, vector<16x32xf32>, vector<16x32xf32> -> vector<16x32xf32>
    %cst_23 = arith.constant dense<0.000000e+00> : vector<32x32xf32>
    %50 = tpu.matmul %0, %49, %cst_23 {dimension_numbers = #tpu.dot_dimension_numbers<[1], [0], [0], [1], [0, 0, 1, 1], [], []>} : vector<32x16xf32>, vector<16x32xf32>, vector<32x32xf32> -> vector<32x32xf32>
    %c32_24 = arith.constant 32 : index
    %c0_25 = arith.constant 0 : index
    %51 = vector.load %arg5[%c32_24, %c0_25] : memref<128x32xf32, #tpu.memory_space<vmem>>, vector<32x32xf32>
    tpu.vector_store %arg5[%c32_24, %c0_25], %50 {strides = array<i32>} : memref<128x32xf32, #tpu.memory_space<vmem>>, vector<32x32xf32>,
    %c64 = arith.constant 64 : index
    %c0_26 = arith.constant 0 : index
    %52 = vector.load %arg0[%c64, %c0_26] : memref<128x16xf32, #tpu.memory_space<vmem>>, vector<16x16xf32>
    %c0_27 = arith.constant 0 : index
    %53 = memref.load %arg3[%c0_27] : memref<8xf32, #tpu.memory_space<smem>>
    %54 = vector.broadcast %53 : f32 to vector<16x16xf32>
    %55 = arith.mulf %52, %54 : vector<16x16xf32>
    %c80 = arith.constant 80 : index
    %c0_28 = arith.constant 0 : index
    %56 = vector.load %arg0[%c80, %c0_28] : memref<128x16xf32, #tpu.memory_space<vmem>>, vector<16x16xf32>
    %c1_29 = arith.constant 1 : index
    %57 = memref.load %arg3[%c1_29] : memref<8xf32, #tpu.memory_space<smem>>
    %58 = vector.broadcast %57 : f32 to vector<16x16xf32>
    %59 = arith.mulf %56, %58 : vector<16x16xf32>
    %60 = arith.addf %55, %59 : vector<16x16xf32>
    %c96 = arith.constant 96 : index
    %c0_30 = arith.constant 0 : index
    %61 = vector.load %arg0[%c96, %c0_30] : memref<128x16xf32, #tpu.memory_space<vmem>>, vector<16x16xf32>
    %c2_31 = arith.constant 2 : index
    %62 = memref.load %arg3[%c2_31] : memref<8xf32, #tpu.memory_space<smem>>
    %63 = vector.broadcast %62 : f32 to vector<16x16xf32>
    %64 = arith.mulf %61, %63 : vector<16x16xf32>
    %65 = arith.addf %60, %64 : vector<16x16xf32>
    %c112 = arith.constant 112 : index
    %c0_32 = arith.constant 0 : index
    %66 = vector.load %arg0[%c112, %c0_32] : memref<128x16xf32, #tpu.memory_space<vmem>>, vector<16x16xf32>
    %c3_33 = arith.constant 3 : index
    %67 = memref.load %arg3[%c3_33] : memref<8xf32, #tpu.memory_space<smem>>
    %68 = vector.broadcast %67 : f32 to vector<16x16xf32>
    %69 = arith.mulf %66, %68 : vector<16x16xf32>
    %70 = arith.addf %65, %69 : vector<16x16xf32>
    %c0_34 = arith.constant 0 : index
    %71 = memref.load %arg4[%c0_34] : memref<2xf32, #tpu.memory_space<smem>>
    %72 = vector.broadcast %71 : f32 to vector<16x16xf32>
    %73 = arith.addf %70, %72 : vector<16x16xf32>
    %cst_35 = arith.constant dense<0.000000e+00> : vector<16x32xf32>
    %74 = tpu.matmul %73, %1, %cst_35 {dimension_numbers = #tpu.dot_dimension_numbers<[1], [0], [0], [1], [0, 0, 1, 1], [], []>} : vector<16x16xf32>, vector<16x32xf32>, vector<16x32xf32> -> vector<16x32xf32>
    %cst_36 = arith.constant dense<0.000000e+00> : vector<32x32xf32>
    %75 = tpu.matmul %0, %74, %cst_36 {dimension_numbers = #tpu.dot_dimension_numbers<[1], [0], [0], [1], [0, 0, 1, 1], [], []>} : vector<32x16xf32>, vector<16x32xf32>, vector<32x32xf32> -> vector<32x32xf32>
    %c64_37 = arith.constant 64 : index
    %c0_38 = arith.constant 0 : index
    %76 = vector.load %arg5[%c64_37, %c0_38] : memref<128x32xf32, #tpu.memory_space<vmem>>, vector<32x32xf32>
    tpu.vector_store %arg5[%c64_37, %c0_38], %75 {strides = array<i32>} : memref<128x32xf32, #tpu.memory_space<vmem>>, vector<32x32xf32>,
    %c64_39 = arith.constant 64 : index
    %c0_40 = arith.constant 0 : index
    %77 = vector.load %arg0[%c64_39, %c0_40] : memref<128x16xf32, #tpu.memory_space<vmem>>, vector<16x16xf32>
    %c4_41 = arith.constant 4 : index
    %78 = memref.load %arg3[%c4_41] : memref<8xf32, #tpu.memory_space<smem>>
    %79 = vector.broadcast %78 : f32 to vector<16x16xf32>
    %80 = arith.mulf %77, %79 : vector<16x16xf32>
    %c80_42 = arith.constant 80 : index
    %c0_43 = arith.constant 0 : index
    %81 = vector.load %arg0[%c80_42, %c0_43] : memref<128x16xf32, #tpu.memory_space<vmem>>, vector<16x16xf32>
    %c5_44 = arith.constant 5 : index
    %82 = memref.load %arg3[%c5_44] : memref<8xf32, #tpu.memory_space<smem>>
    %83 = vector.broadcast %82 : f32 to vector<16x16xf32>
    %84 = arith.mulf %81, %83 : vector<16x16xf32>
    %85 = arith.addf %80, %84 : vector<16x16xf32>
    %c96_45 = arith.constant 96 : index
    %c0_46 = arith.constant 0 : index
    %86 = vector.load %arg0[%c96_45, %c0_46] : memref<128x16xf32, #tpu.memory_space<vmem>>, vector<16x16xf32>
    %c6_47 = arith.constant 6 : index
    %87 = memref.load %arg3[%c6_47] : memref<8xf32, #tpu.memory_space<smem>>
    %88 = vector.broadcast %87 : f32 to vector<16x16xf32>
    %89 = arith.mulf %86, %88 : vector<16x16xf32>
    %90 = arith.addf %85, %89 : vector<16x16xf32>
    %c112_48 = arith.constant 112 : index
    %c0_49 = arith.constant 0 : index
    %91 = vector.load %arg0[%c112_48, %c0_49] : memref<128x16xf32, #tpu.memory_space<vmem>>, vector<16x16xf32>
    %c7_50 = arith.constant 7 : index
    %92 = memref.load %arg3[%c7_50] : memref<8xf32, #tpu.memory_space<smem>>
    %93 = vector.broadcast %92 : f32 to vector<16x16xf32>
    %94 = arith.mulf %91, %93 : vector<16x16xf32>
    %95 = arith.addf %90, %94 : vector<16x16xf32>
    %c1_51 = arith.constant 1 : index
    %96 = memref.load %arg4[%c1_51] : memref<2xf32, #tpu.memory_space<smem>>
    %97 = vector.broadcast %96 : f32 to vector<16x16xf32>
    %98 = arith.addf %95, %97 : vector<16x16xf32>
    %cst_52 = arith.constant dense<0.000000e+00> : vector<16x32xf32>
    %99 = tpu.matmul %98, %1, %cst_52 {dimension_numbers = #tpu.dot_dimension_numbers<[1], [0], [0], [1], [0, 0, 1, 1], [], []>} : vector<16x16xf32>, vector<16x32xf32>, vector<16x32xf32> -> vector<16x32xf32>
    %cst_53 = arith.constant dense<0.000000e+00> : vector<32x32xf32>
    %100 = tpu.matmul %0, %99, %cst_53 {dimension_numbers = #tpu.dot_dimension_numbers<[1], [0], [0], [1], [0, 0, 1, 1], [], []>} : vector<32x16xf32>, vector<16x32xf32>, vector<32x32xf32> -> vector<32x32xf32>
    %c96_54 = arith.constant 96 : index
    %c0_55 = arith.constant 0 : index
    %101 = vector.load %arg5[%c96_54, %c0_55] : memref<128x32xf32, #tpu.memory_space<vmem>>, vector<32x32xf32>
    tpu.vector_store %arg5[%c96_54, %c0_55], %100 {strides = array<i32>} : memref<128x32xf32, #tpu.memory_space<vmem>>, vector<32x32xf32>,
    return
  }
}

</mosaic_0001>

<llo_original>
// kernel: unet_dsv3.1
$region0: #{unet_dsv3.1}
  #allocation0 [shape = 'u32[]', space=smem, size = 0x4, offset = 0x4, fixed_abs, tag = 'smem constant byte address 0x4 - core index']
  #allocation1 [shape = 'u32[144,128]{1,0:T(1,128)}', space=vmem, size = 0x12000, scoped, tag = 'internal scratch']
  %s0 = inlined_call_operand.hbm [shape: f32[128,16], index: 0, kind: input, shape index: {}]
  %s1 = inlined_call_operand.hbm [shape: f32[32,16], index: 1, kind: input, shape index: {}]
  %s2 = inlined_call_operand.vmem [shape: f32[16,32], index: 2, kind: input, shape index: {}]
  %s3 = inlined_call_operand.vmem [shape: f32[8], index: 3, kind: input, shape index: {}]
  %s4 = inlined_call_operand.vmem [shape: f32[2], index: 4, kind: input, shape index: {}]
  %s5 = inlined_call_operand.hbm [shape: f32[128,32], index: 5, kind: output, shape index: {}]
  %s6 = sld [smem:[#allocation0]]
  $region46: #{unet_dsv3.1} parent=0
    _
  %s8 = ssub.s32 1, %s6
  %s9 = scalar_select 0, %s8, %s6
  $region1: #{unet_dsv3.1} parent=0
    #allocation2 [shape = 'u8[65536]{0}', space=vmem, size = 0x10000, scoped, tag = 'input window, operand 0, single buffered']
    #allocation3 [shape = 's32[1]{0}', space=sflag, size = 0x4, scoped, tag = 'scoped memory for unet_dsv3.1']
    #allocation4 [shape = 's32[1]{0}', space=sflag, size = 0x4, scoped, tag = 'scoped memory for unet_dsv3.1']
    #allocation5 [shape = 's32[1]{0}', space=sflag, size = 0x4, scoped, tag = 'scoped memory for unet_dsv3.1']
    #allocation6 [shape = 'u8[16384]{0}', space=vmem, size = 0x4000, scoped, tag = 'input window, operand 1, single buffered']
    #allocation7 [shape = 's32[1]{0}', space=sflag, size = 0x4, scoped, tag = 'scoped memory for unet_dsv3.1']
    #allocation8 [shape = 'u8[512]{0}', space=smem, size = 0x200, scoped, tag = 'input window, operand 3, single buffered']
    #allocation9 [shape = 'u8[512]{0}', space=smem, size = 0x200, scoped, tag = 'input window, operand 4, single buffered']
    #allocation10 [shape = 's32[1]{0}', space=sflag, size = 0x4, scoped, tag = 'scoped memory for unet_dsv3.1']
    #allocation11 [shape = 'u8[65536]{0}', space=vmem, size = 0x10000, scoped, tag = 'output window, operand 0, single buffered']
    %10 = vsyncpa [#allocation3], 0
    %11 = vsyncpa [#allocation7], 0
    %12 = vsyncpa [#allocation5], 0
    %13 = vsyncpa [#allocation10], 0
    %14 = vsyncpa [#allocation4], 0
    // Predicated region
    $region2: #{unet_dsv3.1} parent=1 // pred_check
      _
    $region3: #{unet_dsv3.1} parent=1 // pred_check_branch
      %16 = sbr.rel (0) target = $region5
    $region4: #{unet_dsv3.1} parent=1 // pred_region
      %s18 = ssub.s32 2048, 2048
      %19 = vsyncadd [#allocation3], %s18
      %s20 = sshll.u32 [#allocation2], 4
      %s21 = int_to_ptr.vmem [resolvable:$true] %s20
      %26 = dma.hbm_to_vmem [thread:$0]  %s0, 2048, %s21, [#allocation3], 128, 128, 8
    $region5: #{unet_dsv3.1} parent=1 // pred_fallthru
      _
    // Predicated region
    $region6: #{unet_dsv3.1} parent=1 // pred_check
      _
    $region7: #{unet_dsv3.1} parent=1 // pred_check_branch
      %28 = sbr.rel (0) target = $region9
    $region8: #{unet_dsv3.1} parent=1 // pred_region
      %s30 = ssub.s32 512, 512
      %31 = vsyncadd [#allocation7], %s30
      %s32 = sshll.u32 [#allocation6], 4
      %s33 = int_to_ptr.vmem [resolvable:$true] %s32
      %38 = dma.hbm_to_vmem [thread:$0]  %s1, 512, %s33, [#allocation7], 128, 128, 8
    $region9: #{unet_dsv3.1} parent=1 // pred_fallthru
      _
    // Predicated region
    $region10: #{unet_dsv3.1} parent=1 // pred_check
      _
    $region11: #{unet_dsv3.1} parent=1 // pred_check_branch
      %40 = sbr.rel (0) target = $region13
    $region12: #{unet_dsv3.1} parent=1 // pred_region
      _
    $region13: #{unet_dsv3.1} parent=1 // pred_fallthru
      _
    // Predicated region
    $region14: #{unet_dsv3.1} parent=1 // pred_check
      _
    $region15: #{unet_dsv3.1} parent=1 // pred_check_branch
      %42 = sbr.rel (0) target = $region17
    $region16: #{unet_dsv3.1} parent=1 // pred_region
      %s44 = ssub.s32 16, 16
      %45 = vsyncadd [#allocation5], %s44
      %s47 = sshll.u32 %s3, 4
      %s48 = int_to_ptr.vmem [resolvable:$true] %s47
      %50 = dma.vmem_to_smem %s48, 16, [#allocation8], [#allocation5]
    $region17: #{unet_dsv3.1} parent=1 // pred_fallthru
      _
    // Predicated region
    $region18: #{unet_dsv3.1} parent=1 // pred_check
      _
    $region19: #{unet_dsv3.1} parent=1 // pred_check_branch
      %52 = sbr.rel (0) target = $region21
    $region20: #{unet_dsv3.1} parent=1 // pred_region
      %s54 = ssub.s32 16, 16
      %55 = vsyncadd [#allocation10], %s54
      %s57 = sshll.u32 %s4, 4
      %s58 = int_to_ptr.vmem [resolvable:$true] %s57
      %60 = dma.vmem_to_smem %s58, 16, [#allocation9], [#allocation10]
    $region21: #{unet_dsv3.1} parent=1 // pred_fallthru
      _
    // Predicated region
    $region22: #{unet_dsv3.1} parent=1 // pred_check
      _
    $region23: #{unet_dsv3.1} parent=1 // pred_check_branch
      %62 = sbr.rel (0) target = $region25
    $region24: #{unet_dsv3.1} parent=1 // pred_region
      %63 = dma.done [#allocation3], 2048
    $region25: #{unet_dsv3.1} parent=1 // pred_fallthru
      _
    // Predicated region
    $region26: #{unet_dsv3.1} parent=1 // pred_check
      _
    $region27: #{unet_dsv3.1} parent=1 // pred_check_branch
      %65 = sbr.rel (0) target = $region29
    $region28: #{unet_dsv3.1} parent=1 // pred_region
      %66 = dma.done [#allocation7], 512
    $region29: #{unet_dsv3.1} parent=1 // pred_fallthru
      _
    // Predicated region
    $region30: #{unet_dsv3.1} parent=1 // pred_check
      _
    $region31: #{unet_dsv3.1} parent=1 // pred_check_branch
      %68 = sbr.rel (0) target = $region33
    $region32: #{unet_dsv3.1} parent=1 // pred_region
      %69 = dma.done [#allocation5], 16
    $region33: #{unet_dsv3.1} parent=1 // pred_fallthru
      _
    // Predicated region
    $region34: #{unet_dsv3.1} parent=1 // pred_check
      _
    $region35: #{unet_dsv3.1} parent=1 // pred_check_branch
      %71 = sbr.rel (0) target = $region37
    $region36: #{unet_dsv3.1} parent=1 // pred_region
      %72 = dma.done [#allocation10], 16
    $region37: #{unet_dsv3.1} parent=1 // pred_fallthru
      _
    %73 = sfence
    %v74 = vld [vmem:[#allocation6] sm:$0xff]
    %v75 = vld [vmem:[#allocation6 + $0x8] sm:$0xff]
    %v76 = vld [vmem:[#allocation6 + $0x10] sm:$0xff]
    %v77 = vld [vmem:[#allocation6 + $0x18] sm:$0xff]
    %v78 = vld [vmem:[%s2] sm:$0xff]
    %v79 = vld [vmem:[%s2 + $0x8] sm:$0xff]
    %v80 = vld [vmem:[#allocation2] sm:$0xff]
    %v81 = vld [vmem:[#allocation2 + $0x8] sm:$0xff]
    %s82 = sld [smem:[#allocation8]]
    %v83 = vstv %s82
    %v84 = vmul.f32 %v80, %v83
    %v85 = vmul.f32 %v81, %v83
    %v86 = vld [vmem:[#allocation2 + $0x10] sm:$0xff]
    %v87 = vld [vmem:[#allocation2 + $0x18] sm:$0xff]
    %s88 = sld [smem:[#allocation8 + $0x1]]
    %v89 = vstv %s88
    %v90 = vmul.f32 %v86, %v89
    %v91 = vmul.f32 %v87, %v89
    %v92 = vadd.f32 %v84, %v90
    %v93 = vadd.f32 %v85, %v91
    %v94 = vld [vmem:[#allocation2 + $0x20] sm:$0xff]
    %v95 = vld [vmem:[#allocation2 + $0x28] sm:$0xff]
    %s96 = sld [smem:[#allocation8 + $0x2]]
    %v97 = vstv %s96
    %v98 = vmul.f32 %v94, %v97
    %v99 = vmul.f32 %v95, %v97
    %v100 = vadd.f32 %v92, %v98
    %v101 = vadd.f32 %v93, %v99
    %v102 = vld [vmem:[#allocation2 + $0x30] sm:$0xff]
    %v103 = vld [vmem:[#allocation2 + $0x38] sm:$0xff]
    %s104 = sld [smem:[#allocation8 + $0x3]]
    %v105 = vstv %s104
    %v106 = vmul.f32 %v102, %v105
    %v107 = vmul.f32 %v103, %v105
    %v108 = vadd.f32 %v100, %v106
    %v109 = vadd.f32 %v101, %v107
    %s110 = sld [smem:[#allocation9]]
    %v111 = vstv %s110
    %v112 = vadd.f32 %v108, %v111
    %v113 = vadd.f32 %v109, %v111
    %vm114 = vcmask 130048
    %v116 = vsel %vm114, %v112, 0
    %v119 = vsel %vm114, %v113, 0
    %121 = vmatprep.subr.mxu0 0.0
    %122 = vmatpush1.msra.mxu0 %v78
    %123 = vmatprep.subr.mxu0 0.0
    %124 = vmatpush1.msra.mxu0 %v79
    %125 = vmatprep.subr.mxu0 0.0
    %126 = vmatpush1.msra.mxu0 0.0
    %127 = vmatprep.subr.mxu0 0.0
    %128 = vmatpush1.msra.mxu0 0.0
    %129 = vmatprep.subr.mxu0 0.0
    %130 = vmatpush1.msra.mxu0 0.0
    %131 = vmatprep.subr.mxu0 0.0
    %132 = vmatpush1.msra.mxu0 0.0
    %133 = vmatprep.subr.mxu0 0.0
    %134 = vmatpush1.msra.mxu0 0.0
    %135 = vmatprep.subr.mxu0 0.0
    %136 = vmatpush1.msra.mxu0 0.0
    %137 = vmatprep.subr.mxu0 0.0
    %138 = vmatpush1.msra.mxu0 0.0
    %139 = vmatprep.subr.mxu0 0.0
    %140 = vmatpush1.msra.mxu0 0.0
    %141 = vmatprep.subr.mxu0 0.0
    %142 = vmatpush1.msra.mxu0 0.0
    %143 = vmatprep.subr.mxu0 0.0
    %144 = vmatpush1.msra.mxu0 0.0
    %145 = vmatprep.subr.mxu0 0.0
    %146 = vmatpush1.msra.mxu0 0.0
    %147 = vmatprep.subr.mxu0 0.0
    %148 = vmatpush1.msra.mxu0 0.0
    %149 = vmatprep.subr.mxu0 0.0
    %150 = vmatpush1.msra.mxu0 0.0
    %151 = vmatprep.subr.mxu0 0.0
    %152 = vmatpush1.msra.mxu0 0.0
    %153 = vmatprep.subr.mxu0 0.0
    %154 = vmatpush1.msra.mxu0 0.0
    %155 = vmatprep.subr.mxu0 0.0
    %156 = vmatpush1.msra.mxu0 0.0
    %157 = vmatprep.subr.mxu0 0.0
    %158 = vmatpush1.msra.mxu0 0.0
    %159 = vmatprep.subr.mxu0 0.0
    %160 = vmatpush1.msra.mxu0 0.0
    %161 = vmatprep.subr.mxu0 0.0
    %162 = vmatpush1.msra.mxu0 0.0
    %163 = vmatprep.subr.mxu0 0.0
    %164 = vmatpush1.msra.mxu0 0.0
    %165 = vmatprep.subr.mxu0 0.0
    %166 = vmatpush1.msra.mxu0 0.0
    %167 = vmatprep.subr.mxu0 0.0
    %168 = vmatpush1.msra.mxu0 0.0
    %169 = vmatprep.subr.mxu0 0.0
    %170 = vmatpush1.msra.mxu0 0.0
    %171 = vmatprep.subr.mxu0 0.0
    %172 = vmatpush1.msra.mxu0 0.0
    %173 = vmatprep.subr.mxu0 0.0
    %174 = vmatpush1.msra.mxu0 0.0
    %175 = vmatprep.subr.mxu0 0.0
    %176 = vmatpush1.msra.mxu0 0.0
    %177 = vmatprep.subr.mxu0 0.0
    %178 = vmatpush1.msra.mxu0 0.0
    %179 = vmatprep.subr.mxu0 0.0
    %180 = vmatpush1.msra.mxu0 0.0
    %181 = vmatprep.subr.mxu0 0.0
    %182 = vmatpush1.msra.mxu0 0.0
    %183 = vmatprep.subr.mxu0 0.0
    %184 = vmatpush1.msra.mxu0 0.0
    %185 = vmatprep.mubr.f32.mxu0 0.0
    %186 = vmatmul.mubr.f32.gmra.mrb[0].mxu0 %v116
    %v187 = vpop.f32.mrb[0].mxu0
    %v188 = vadd.f32 0.0, %v187
    %v189 = vpop.f32.mrb[0].mxu0
    %190 = vmatprep.mubr.f32.mxu0 0.0
    %191 = vmatmul.mubr.f32.gmra.mrb[0].mxu0 %v119
    %v192 = vpop.f32.mrb[0].mxu0
    %v193 = vadd.f32 0.0, %v192
    %v194 = vpop.f32.mrb[0].mxu0
    %195 = vdwg.mxu0
    %v197 = vsel %vm114, %v74, 0
    %v200 = vsel %vm114, %v75, 0
    %v203 = vsel %vm114, %v76, 0
    %v206 = vsel %vm114, %v77, 0
    %208 = vmatprep.subr.mxu0 0.0
    %209 = vmatpush1.msra.mxu0 %v188
    %210 = vmatprep.subr.mxu0 0.0
    %211 = vmatpush1.msra.mxu0 %v193
    %212 = vmatprep.subr.mxu0 0.0
    %213 = vmatpush1.msra.mxu0 0.0
    %214 = vmatprep.subr.mxu0 0.0
    %215 = vmatpush1.msra.mxu0 0.0
    %216 = vmatprep.subr.mxu0 0.0
    %217 = vmatpush1.msra.mxu0 0.0
    %218 = vmatprep.subr.mxu0 0.0
    %219 = vmatpush1.msra.mxu0 0.0
    %220 = vmatprep.subr.mxu0 0.0
    %221 = vmatpush1.msra.mxu0 0.0
    %222 = vmatprep.subr.mxu0 0.0
    %223 = vmatpush1.msra.mxu0 0.0
    %224 = vmatprep.subr.mxu0 0.0
    %225 = vmatpush1.msra.mxu0 0.0
    %226 = vmatprep.subr.mxu0 0.0
    %227 = vmatpush1.msra.mxu0 0.0
    %228 = vmatprep.subr.mxu0 0.0
    %229 = vmatpush1.msra.mxu0 0.0
    %230 = vmatprep.subr.mxu0 0.0
    %231 = vmatpush1.msra.mxu0 0.0
    %232 = vmatprep.subr.mxu0 0.0
    %233 = vmatpush1.msra.mxu0 0.0
    %234 = vmatprep.subr.mxu0 0.0
    %235 = vmatpush1.msra.mxu0 0.0
    %236 = vmatprep.subr.mxu0 0.0
    %237 = vmatpush1.msra.mxu0 0.0
    %238 = vmatprep.subr.mxu0 0.0
    %239 = vmatpush1.msra.mxu0 0.0
    %240 = vmatprep.subr.mxu0 0.0
    %241 = vmatpush1.msra.mxu0 0.0
    %242 = vmatprep.subr.mxu0 0.0
    %243 = vmatpush1.msra.mxu0 0.0
    %244 = vmatprep.subr.mxu0 0.0
    %245 = vmatpush1.msra.mxu0 0.0
    %246 = vmatprep.subr.mxu0 0.0
    %247 = vmatpush1.msra.mxu0 0.0
    %248 = vmatprep.subr.mxu0 0.0
    %249 = vmatpush1.msra.mxu0 0.0
    %250 = vmatprep.subr.mxu0 0.0
    %251 = vmatpush1.msra.mxu0 0.0
    %252 = vmatprep.subr.mxu0 0.0
    %253 = vmatpush1.msra.mxu0 0.0
    %254 = vmatprep.subr.mxu0 0.0
    %255 = vmatpush1.msra.mxu0 0.0
    %256 = vmatprep.subr.mxu0 0.0
    %257 = vmatpush1.msra.mxu0 0.0
    %258 = vmatprep.subr.mxu0 0.0
    %259 = vmatpush1.msra.mxu0 0.0
    %260 = vmatprep.subr.mxu0 0.0
    %261 = vmatpush1.msra.mxu0 0.0
    %262 = vmatprep.subr.mxu0 0.0
    %263 = vmatpush1.msra.mxu0 0.0
    %264 = vmatprep.subr.mxu0 0.0
    %265 = vmatpush1.msra.mxu0 0.0
    %266 = vmatprep.subr.mxu0 0.0
    %267 = vmatpush1.msra.mxu0 0.0
    %268 = vmatprep.subr.mxu0 0.0
    %269 = vmatpush1.msra.mxu0 0.0
    %270 = vmatprep.subr.mxu0 0.0
    %271 = vmatpush1.msra.mxu0 0.0
    %272 = vmatprep.mubr.f32.mxu0 0.0
    %273 = vmatmul.mubr.f32.gmra.mrb[0].mxu0 %v197
    %v274 = vpop.f32.mrb[0].mxu0
    %v275 = vadd.f32 0.0, %v274
    %v276 = vpop.f32.mrb[0].mxu0
    %277 = vmatprep.mubr.f32.mxu0 0.0
    %278 = vmatmul.mubr.f32.gmra.mrb[0].mxu0 %v200
    %v279 = vpop.f32.mrb[0].mxu0
    %v280 = vadd.f32 0.0, %v279
    %v281 = vpop.f32.mrb[0].mxu0
    %282 = vmatprep.mubr.f32.mxu0 0.0
    %283 = vmatmul.mubr.f32.gmra.mrb[0].mxu0 %v203
    %v284 = vpop.f32.mrb[0].mxu0
    %v285 = vadd.f32 0.0, %v284
    %v286 = vpop.f32.mrb[0].mxu0
    %287 = vmatprep.mubr.f32.mxu0 0.0
    %288 = vmatmul.mubr.f32.gmra.mrb[0].mxu0 %v206
    %v289 = vpop.f32.mrb[0].mxu0
    %v290 = vadd.f32 0.0, %v289
    %v291 = vpop.f32.mrb[0].mxu0
    %292 = vdwg.mxu0
    %vm293 = vcmask 261120
    %294 = vst.msk [vmem:[#allocation11] sm:$0xff] %vm293, %v275
    %295 = vst.msk [vmem:[#allocation11 + $0x8] sm:$0xff] %vm293, %v280
    %296 = vst.msk [vmem:[#allocation11 + $0x10] sm:$0xff] %vm293, %v285
    %297 = vst.msk [vmem:[#allocation11 + $0x18] sm:$0xff] %vm293, %v290
    %v298 = vld [vmem:[#allocation2] sm:$0xff]
    %v299 = vld [vmem:[#allocation2 + $0x8] sm:$0xff]
    %s300 = sld [smem:[#allocation8 + $0x4]]
    %v301 = vstv %s300
    %v302 = vmul.f32 %v298, %v301
    %v303 = vmul.f32 %v299, %v301
    %v304 = vld [vmem:[#allocation2 + $0x10] sm:$0xff]
    %v305 = vld [vmem:[#allocation2 + $0x18] sm:$0xff]
    %s306 = sld [smem:[#allocation8 + $0x5]]
    %v307 = vstv %s306
    %v308 = vmul.f32 %v304, %v307
    %v309 = vmul.f32 %v305, %v307
    %v310 = vadd.f32 %v302, %v308
    %v311 = vadd.f32 %v303, %v309
    %v312 = vld [vmem:[#allocation2 + $0x20] sm:$0xff]
    %v313 = vld [vmem:[#allocation2 + $0x28] sm:$0xff]
    %s314 = sld [smem:[#allocation8 + $0x6]]
    %v315 = vstv %s314
    %v316 = vmul.f32 %v312, %v315
    %v317 = vmul.f32 %v313, %v315
    %v318 = vadd.f32 %v310, %v316
    %v319 = vadd.f32 %v311, %v317
    %v320 = vld [vmem:[#allocation2 + $0x30] sm:$0xff]
    %v321 = vld [vmem:[#allocation2 + $0x38] sm:$0xff]
    %s322 = sld [smem:[#allocation8 + $0x7]]
    %v323 = vstv %s322
    %v324 = vmul.f32 %v320, %v323
    %v325 = vmul.f32 %v321, %v323
    %v326 = vadd.f32 %v318, %v324
    %v327 = vadd.f32 %v319, %v325
    %s328 = sld [smem:[#allocation9 + $0x1]]
    %v329 = vstv %s328
    %v330 = vadd.f32 %v326, %v329
    %v331 = vadd.f32 %v327, %v329
    %v333 = vsel %vm114, %v330, 0
    %v336 = vsel %vm114, %v331, 0
    %338 = vmatprep.subr.mxu0 0.0
    %339 = vmatpush1.msra.mxu0 %v78
    %340 = vmatprep.subr.mxu0 0.0
    %341 = vmatpush1.msra.mxu0 %v79
    %342 = vmatprep.subr.mxu0 0.0
    %343 = vmatpush1.msra.mxu0 0.0
    %344 = vmatprep.subr.mxu0 0.0
    %345 = vmatpush1.msra.mxu0 0.0
    %346 = vmatprep.subr.mxu0 0.0
    %347 = vmatpush1.msra.mxu0 0.0
    %348 = vmatprep.subr.mxu0 0.0
    %349 = vmatpush1.msra.mxu0 0.0
    %350 = vmatprep.subr.mxu0 0.0
    %351 = vmatpush1.msra.mxu0 0.0
    %352 = vmatprep.subr.mxu0 0.0
    %353 = vmatpush1.msra.mxu0 0.0
    %354 = vmatprep.subr.mxu0 0.0
    %355 = vmatpush1.msra.mxu0 0.0
    %356 = vmatprep.subr.mxu0 0.0
    %357 = vmatpush1.msra.mxu0 0.0
    %358 = vmatprep.subr.mxu0 0.0
    %359 = vmatpush1.msra.mxu0 0.0
    %360 = vmatprep.subr.mxu0 0.0
    %361 = vmatpush1.msra.mxu0 0.0
    %362 = vmatprep.subr.mxu0 0.0
    %363 = vmatpush1.msra.mxu0 0.0
    %364 = vmatprep.subr.mxu0 0.0
    %365 = vmatpush1.msra.mxu0 0.0
    %366 = vmatprep.subr.mxu0 0.0
    %367 = vmatpush1.msra.mxu0 0.0
    %368 = vmatprep.subr.mxu0 0.0
    %369 = vmatpush1.msra.mxu0 0.0
    %370 = vmatprep.subr.mxu0 0.0
    %371 = vmatpush1.msra.mxu0 0.0
    %372 = vmatprep.subr.mxu0 0.0
    %373 = vmatpush1.msra.mxu0 0.0
    %374 = vmatprep.subr.mxu0 0.0
    %375 = vmatpush1.msra.mxu0 0.0
    %376 = vmatprep.subr.mxu0 0.0
    %377 = vmatpush1.msra.mxu0 0.0
    %378 = vmatprep.subr.mxu0 0.0
    %379 = vmatpush1.msra.mxu0 0.0
    %380 = vmatprep.subr.mxu0 0.0
    %381 = vmatpush1.msra.mxu0 0.0
    %382 = vmatprep.subr.mxu0 0.0
    %383 = vmatpush1.msra.mxu0 0.0
    %384 = vmatprep.subr.mxu0 0.0
    %385 = vmatpush1.msra.mxu0 0.0
    %386 = vmatprep.subr.mxu0 0.0
    %387 = vmatpush1.msra.mxu0 0.0
    %388 = vmatprep.subr.mxu0 0.0
    %389 = vmatpush1.msra.mxu0 0.0
    %390 = vmatprep.subr.mxu0 0.0
    %391 = vmatpush1.msra.mxu0 0.0
    %392 = vmatprep.subr.mxu0 0.0
    %393 = vmatpush1.msra.mxu0 0.0
    %394 = vmatprep.subr.mxu0 0.0
    %395 = vmatpush1.msra.mxu0 0.0
    %396 = vmatprep.subr.mxu0 0.0
    %397 = vmatpush1.msra.mxu0 0.0
    %398 = vmatprep.subr.mxu0 0.0
    %399 = vmatpush1.msra.mxu0 0.0
    %400 = vmatprep.subr.mxu0 0.0
    %401 = vmatpush1.msra.mxu0 0.0
    %402 = vmatprep.mubr.f32.mxu0 0.0
    %403 = vmatmul.mubr.f32.gmra.mrb[0].mxu0 %v333
    %v404 = vpop.f32.mrb[0].mxu0
    %v405 = vadd.f32 0.0, %v404
    %v406 = vpop.f32.mrb[0].mxu0
    %407 = vmatprep.mubr.f32.mxu0 0.0
    %408 = vmatmul.mubr.f32.gmra.mrb[0].mxu0 %v336
    %v409 = vpop.f32.mrb[0].mxu0
    %v410 = vadd.f32 0.0, %v409
    %v411 = vpop.f32.mrb[0].mxu0
    %412 = vdwg.mxu0
    %413 = vmatprep.subr.mxu0 0.0
    %414 = vmatpush1.msra.mxu0 %v405
    %415 = vmatprep.subr.mxu0 0.0
    %416 = vmatpush1.msra.mxu0 %v410
    %417 = vmatprep.subr.mxu0 0.0
    %418 = vmatpush1.msra.mxu0 0.0
    %419 = vmatprep.subr.mxu0 0.0
    %420 = vmatpush1.msra.mxu0 0.0
    %421 = vmatprep.subr.mxu0 0.0
    %422 = vmatpush1.msra.mxu0 0.0
    %423 = vmatprep.subr.mxu0 0.0
    %424 = vmatpush1.msra.mxu0 0.0
    %425 = vmatprep.subr.mxu0 0.0
    %426 = vmatpush1.msra.mxu0 0.0
    %427 = vmatprep.subr.mxu0 0.0
    %428 = vmatpush1.msra.mxu0 0.0
    %429 = vmatprep.subr.mxu0 0.0
    %430 = vmatpush1.msra.mxu0 0.0
    %431 = vmatprep.subr.mxu0 0.0
    %432 = vmatpush1.msra.mxu0 0.0
    %433 = vmatprep.subr.mxu0 0.0
    %434 = vmatpush1.msra.mxu0 0.0
    %435 = vmatprep.subr.mxu0 0.0
    %436 = vmatpush1.msra.mxu0 0.0
    %437 = vmatprep.subr.mxu0 0.0
    %438 = vmatpush1.msra.mxu0 0.0
    %439 = vmatprep.subr.mxu0 0.0
    %440 = vmatpush1.msra.mxu0 0.0
    %441 = vmatprep.subr.mxu0 0.0
    %442 = vmatpush1.msra.mxu0 0.0
    %443 = vmatprep.subr.mxu0 0.0
    %444 = vmatpush1.msra.mxu0 0.0
    %445 = vmatprep.subr.mxu0 0.0
    %446 = vmatpush1.msra.mxu0 0.0
    %447 = vmatprep.subr.mxu0 0.0
    %448 = vmatpush1.msra.mxu0 0.0
    %449 = vmatprep.subr.mxu0 0.0
    %450 = vmatpush1.msra.mxu0 0.0
    %451 = vmatprep.subr.mxu0 0.0
    %452 = vmatpush1.msra.mxu0 0.0
    %453 = vmatprep.subr.mxu0 0.0
    %454 = vmatpush1.msra.mxu0 0.0
    %455 = vmatprep.subr.mxu0 0.0
    %456 = vmatpush1.msra.mxu0 0.0
    %457 = vmatprep.subr.mxu0 0.0
    %458 = vmatpush1.msra.mxu0 0.0
    %459 = vmatprep.subr.mxu0 0.0
    %460 = vmatpush1.msra.mxu0 0.0
    %461 = vmatprep.subr.mxu0 0.0
    %462 = vmatpush1.msra.mxu0 0.0
    %463 = vmatprep.subr.mxu0 0.0
    %464 = vmatpush1.msra.mxu0 0.0
    %465 = vmatprep.subr.mxu0 0.0
    %466 = vmatpush1.msra.mxu0 0.0
    %467 = vmatprep.subr.mxu0 0.0
    %468 = vmatpush1.msra.mxu0 0.0
    %469 = vmatprep.subr.mxu0 0.0
    %470 = vmatpush1.msra.mxu0 0.0
    %471 = vmatprep.subr.mxu0 0.0
    %472 = vmatpush1.msra.mxu0 0.0
    %473 = vmatprep.subr.mxu0 0.0
    %474 = vmatpush1.msra.mxu0 0.0
    %475 = vmatprep.subr.mxu0 0.0
    %476 = vmatpush1.msra.mxu0 0.0
    %477 = vmatprep.mubr.f32.mxu0 0.0
    %478 = vmatmul.mubr.f32.gmra.mrb[0].mxu0 %v197
    %v479 = vpop.f32.mrb[0].mxu0
    %v480 = vadd.f32 0.0, %v479
    %v481 = vpop.f32.mrb[0].mxu0
    %482 = vmatprep.mubr.f32.mxu0 0.0
    %483 = vmatmul.mubr.f32.gmra.mrb[0].mxu0 %v200
    %v484 = vpop.f32.mrb[0].mxu0
    %v485 = vadd.f32 0.0, %v484
    %v486 = vpop.f32.mrb[0].mxu0
    %487 = vmatprep.mubr.f32.mxu0 0.0
    %488 = vmatmul.mubr.f32.gmra.mrb[0].mxu0 %v203
    %v489 = vpop.f32.mrb[0].mxu0
    %v490 = vadd.f32 0.0, %v489
    %v491 = vpop.f32.mrb[0].mxu0
    %492 = vmatprep.mubr.f32.mxu0 0.0
    %493 = vmatmul.mubr.f32.gmra.mrb[0].mxu0 %v206
    %v494 = vpop.f32.mrb[0].mxu0
    %v495 = vadd.f32 0.0, %v494
    %v496 = vpop.f32.mrb[0].mxu0
    %497 = vdwg.mxu0
    %498 = vst.msk [vmem:[#allocation11 + $0x20] sm:$0xff] %vm293, %v480
    %499 = vst.msk [vmem:[#allocation11 + $0x28] sm:$0xff] %vm293, %v485
    %500 = vst.msk [vmem:[#allocation11 + $0x30] sm:$0xff] %vm293, %v490
    %501 = vst.msk [vmem:[#allocation11 + $0x38] sm:$0xff] %vm293, %v495
    %v502 = vld [vmem:[#allocation2 + $0x40] sm:$0xff]
    %v503 = vld [vmem:[#allocation2 + $0x48] sm:$0xff]
    %s504 = sld [smem:[#allocation8]]
    %v505 = vstv %s504
    %v506 = vmul.f32 %v502, %v505
    %v507 = vmul.f32 %v503, %v505
    %v508 = vld [vmem:[#allocation2 + $0x50] sm:$0xff]
    %v509 = vld [vmem:[#allocation2 + $0x58] sm:$0xff]
    %s510 = sld [smem:[#allocation8 + $0x1]]
    %v511 = vstv %s510
    %v512 = vmul.f32 %v508, %v511
    %v513 = vmul.f32 %v509, %v511
    %v514 = vadd.f32 %v506, %v512
    %v515 = vadd.f32 %v507, %v513
    %v516 = vld [vmem:[#allocation2 + $0x60] sm:$0xff]
    %v517 = vld [vmem:[#allocation2 + $0x68] sm:$0xff]
    %s518 = sld [smem:[#allocation8 + $0x2]]
    %v519 = vstv %s518
    %v520 = vmul.f32 %v516, %v519
    %v521 = vmul.f32 %v517, %v519
    %v522 = vadd.f32 %v514, %v520
    %v523 = vadd.f32 %v515, %v521
    %v524 = vld [vmem:[#allocation2 + $0x70] sm:$0xff]
    %v525 = vld [vmem:[#allocation2 + $0x78] sm:$0xff]
    %s526 = sld [smem:[#allocation8 + $0x3]]
    %v527 = vstv %s526
    %v528 = vmul.f32 %v524, %v527
    %v529 = vmul.f32 %v525, %v527
    %v530 = vadd.f32 %v522, %v528
    %v531 = vadd.f32 %v523, %v529
    %s532 = sld [smem:[#allocation9]]
    %v533 = vstv %s532
    %v534 = vadd.f32 %v530, %v533
    %v535 = vadd.f32 %v531, %v533
    %v537 = vsel %vm114, %v534, 0
    %v540 = vsel %vm114, %v535, 0
    %542 = vmatprep.subr.mxu0 0.0
    %543 = vmatpush1.msra.mxu0 %v78
    %544 = vmatprep.subr.mxu0 0.0
    %545 = vmatpush1.msra.mxu0 %v79
    %546 = vmatprep.subr.mxu0 0.0
    %547 = vmatpush1.msra.mxu0 0.0
    %548 = vmatprep.subr.mxu0 0.0
    %549 = vmatpush1.msra.mxu0 0.0
    %550 = vmatprep.subr.mxu0 0.0
    %551 = vmatpush1.msra.mxu0 0.0
    %552 = vmatprep.subr.mxu0 0.0
    %553 = vmatpush1.msra.mxu0 0.0
    %554 = vmatprep.subr.mxu0 0.0
    %555 = vmatpush1.msra.mxu0 0.0
    %556 = vmatprep.subr.mxu0 0.0
    %557 = vmatpush1.msra.mxu0 0.0
    %558 = vmatprep.subr.mxu0 0.0
    %559 = vmatpush1.msra.mxu0 0.0
    %560 = vmatprep.subr.mxu0 0.0
    %561 = vmatpush1.msra.mxu0 0.0
    %562 = vmatprep.subr.mxu0 0.0
    %563 = vmatpush1.msra.mxu0 0.0
    %564 = vmatprep.subr.mxu0 0.0
    %565 = vmatpush1.msra.mxu0 0.0
    %566 = vmatprep.subr.mxu0 0.0
    %567 = vmatpush1.msra.mxu0 0.0
    %568 = vmatprep.subr.mxu0 0.0
    %569 = vmatpush1.msra.mxu0 0.0
    %570 = vmatprep.subr.mxu0 0.0
    %571 = vmatpush1.msra.mxu0 0.0
    %572 = vmatprep.subr.mxu0 0.0
    %573 = vmatpush1.msra.mxu0 0.0
    %574 = vmatprep.subr.mxu0 0.0
    %575 = vmatpush1.msra.mxu0 0.0
    %576 = vmatprep.subr.mxu0 0.0
    %577 = vmatpush1.msra.mxu0 0.0
    %578 = vmatprep.subr.mxu0 0.0
    %579 = vmatpush1.msra.mxu0 0.0
    %580 = vmatprep.subr.mxu0 0.0
    %581 = vmatpush1.msra.mxu0 0.0
    %582 = vmatprep.subr.mxu0 0.0
    %583 = vmatpush1.msra.mxu0 0.0
    %584 = vmatprep.subr.mxu0 0.0
    %585 = vmatpush1.msra.mxu0 0.0
    %586 = vmatprep.subr.mxu0 0.0
    %587 = vmatpush1.msra.mxu0 0.0
    %588 = vmatprep.subr.mxu0 0.0
    %589 = vmatpush1.msra.mxu0 0.0
    %590 = vmatprep.subr.mxu0 0.0
    %591 = vmatpush1.msra.mxu0 0.0
    %592 = vmatprep.subr.mxu0 0.0
    %593 = vmatpush1.msra.mxu0 0.0
    %594 = vmatprep.subr.mxu0 0.0
    %595 = vmatpush1.msra.mxu0 0.0
    %596 = vmatprep.subr.mxu0 0.0
    %597 = vmatpush1.msra.mxu0 0.0
    %598 = vmatprep.subr.mxu0 0.0
    %599 = vmatpush1.msra.mxu0 0.0
    %600 = vmatprep.subr.mxu0 0.0
    %601 = vmatpush1.msra.mxu0 0.0
    %602 = vmatprep.subr.mxu0 0.0
    %603 = vmatpush1.msra.mxu0 0.0
    %604 = vmatprep.subr.mxu0 0.0
    %605 = vmatpush1.msra.mxu0 0.0
    %606 = vmatprep.mubr.f32.mxu0 0.0
    %607 = vmatmul.mubr.f32.gmra.mrb[0].mxu0 %v537
    %v608 = vpop.f32.mrb[0].mxu0
    %v609 = vadd.f32 0.0, %v608
    %v610 = vpop.f32.mrb[0].mxu0
    %611 = vmatprep.mubr.f32.mxu0 0.0
    %612 = vmatmul.mubr.f32.gmra.mrb[0].mxu0 %v540
    %v613 = vpop.f32.mrb[0].mxu0
    %v614 = vadd.f32 0.0, %v613
    %v615 = vpop.f32.mrb[0].mxu0
    %616 = vdwg.mxu0
    %617 = vmatprep.subr.mxu0 0.0
    %618 = vmatpush1.msra.mxu0 %v609
    %619 = vmatprep.subr.mxu0 0.0
    %620 = vmatpush1.msra.mxu0 %v614
    %621 = vmatprep.subr.mxu0 0.0
    %622 = vmatpush1.msra.mxu0 0.0
    %623 = vmatprep.subr.mxu0 0.0
    %624 = vmatpush1.msra.mxu0 0.0
    %625 = vmatprep.subr.mxu0 0.0
    %626 = vmatpush1.msra.mxu0 0.0
    %627 = vmatprep.subr.mxu0 0.0
    %628 = vmatpush1.msra.mxu0 0.0
    %629 = vmatprep.subr.mxu0 0.0
    %630 = vmatpush1.msra.mxu0 0.0
    %631 = vmatprep.subr.mxu0 0.0
    %632 = vmatpush1.msra.mxu0 0.0
    %633 = vmatprep.subr.mxu0 0.0
    %634 = vmatpush1.msra.mxu0 0.0
    %635 = vmatprep.subr.mxu0 0.0
    %636 = vmatpush1.msra.mxu0 0.0
    %637 = vmatprep.subr.mxu0 0.0
    %638 = vmatpush1.msra.mxu0 0.0
    %639 = vmatprep.subr.mxu0 0.0
    %640 = vmatpush1.msra.mxu0 0.0
    %641 = vmatprep.subr.mxu0 0.0
    %642 = vmatpush1.msra.mxu0 0.0
    %643 = vmatprep.subr.mxu0 0.0
    %644 = vmatpush1.msra.mxu0 0.0
    %645 = vmatprep.subr.mxu0 0.0
    %646 = vmatpush1.msra.mxu0 0.0
    %647 = vmatprep.subr.mxu0 0.0
    %648 = vmatpush1.msra.mxu0 0.0
    %649 = vmatprep.subr.mxu0 0.0
    %650 = vmatpush1.msra.mxu0 0.0
    %651 = vmatprep.subr.mxu0 0.0
    %652 = vmatpush1.msra.mxu0 0.0
    %653 = vmatprep.subr.mxu0 0.0
    %654 = vmatpush1.msra.mxu0 0.0
    %655 = vmatprep.subr.mxu0 0.0
    %656 = vmatpush1.msra.mxu0 0.0
    %657 = vmatprep.subr.mxu0 0.0
    %658 = vmatpush1.msra.mxu0 0.0
    %659 = vmatprep.subr.mxu0 0.0
    %660 = vmatpush1.msra.mxu0 0.0
    %661 = vmatprep.subr.mxu0 0.0
    %662 = vmatpush1.msra.mxu0 0.0
    %663 = vmatprep.subr.mxu0 0.0
    %664 = vmatpush1.msra.mxu0 0.0
    %665 = vmatprep.subr.mxu0 0.0
    %666 = vmatpush1.msra.mxu0 0.0
    %667 = vmatprep.subr.mxu0 0.0
    %668 = vmatpush1.msra.mxu0 0.0
    %669 = vmatprep.subr.mxu0 0.0
    %670 = vmatpush1.msra.mxu0 0.0
    %671 = vmatprep.subr.mxu0 0.0
    %672 = vmatpush1.msra.mxu0 0.0
    %673 = vmatprep.subr.mxu0 0.0
    %674 = vmatpush1.msra.mxu0 0.0
    %675 = vmatprep.subr.mxu0 0.0
    %676 = vmatpush1.msra.mxu0 0.0
    %677 = vmatprep.subr.mxu0 0.0
    %678 = vmatpush1.msra.mxu0 0.0
    %679 = vmatprep.subr.mxu0 0.0
    %680 = vmatpush1.msra.mxu0 0.0
    %681 = vmatprep.mubr.f32.mxu0 0.0
    %682 = vmatmul.mubr.f32.gmra.mrb[0].mxu0 %v197
    %v683 = vpop.f32.mrb[0].mxu0
    %v684 = vadd.f32 0.0, %v683
    %v685 = vpop.f32.mrb[0].mxu0
    %686 = vmatprep.mubr.f32.mxu0 0.0
    %687 = vmatmul.mubr.f32.gmra.mrb[0].mxu0 %v200
    %v688 = vpop.f32.mrb[0].mxu0
    %v689 = vadd.f32 0.0, %v688
    %v690 = vpop.f32.mrb[0].mxu0
    %691 = vmatprep.mubr.f32.mxu0 0.0
    %692 = vmatmul.mubr.f32.gmra.mrb[0].mxu0 %v203
    %v693 = vpop.f32.mrb[0].mxu0
    %v694 = vadd.f32 0.0, %v693
    %v695 = vpop.f32.mrb[0].mxu0
    %696 = vmatprep.mubr.f32.mxu0 0.0
    %697 = vmatmul.mubr.f32.gmra.mrb[0].mxu0 %v206
    %v698 = vpop.f32.mrb[0].mxu0
    %v699 = vadd.f32 0.0, %v698
    %v700 = vpop.f32.mrb[0].mxu0
    %701 = vdwg.mxu0
    %702 = vst.msk [vmem:[#allocation11 + $0x40] sm:$0xff] %vm293, %v684
    %703 = vst.msk [vmem:[#allocation11 + $0x48] sm:$0xff] %vm293, %v689
    %704 = vst.msk [vmem:[#allocation11 + $0x50] sm:$0xff] %vm293, %v694
    %705 = vst.msk [vmem:[#allocation11 + $0x58] sm:$0xff] %vm293, %v699
    %v706 = vld [vmem:[#allocation2 + $0x40] sm:$0xff]
    %v707 = vld [vmem:[#allocation2 + $0x48] sm:$0xff]
    %s708 = sld [smem:[#allocation8 + $0x4]]
    %v709 = vstv %s708
    %v710 = vmul.f32 %v706, %v709
    %v711 = vmul.f32 %v707, %v709
    %v712 = vld [vmem:[#allocation2 + $0x50] sm:$0xff]
    %v713 = vld [vmem:[#allocation2 + $0x58] sm:$0xff]
    %s714 = sld [smem:[#allocation8 + $0x5]]
    %v715 = vstv %s714
    %v716 = vmul.f32 %v712, %v715
    %v717 = vmul.f32 %v713, %v715
    %v718 = vadd.f32 %v710, %v716
    %v719 = vadd.f32 %v711, %v717
    %v720 = vld [vmem:[#allocation2 + $0x60] sm:$0xff]
    %v721 = vld [vmem:[#allocation2 + $0x68] sm:$0xff]
    %s722 = sld [smem:[#allocation8 + $0x6]]
    %v723 = vstv %s722
    %v724 = vmul.f32 %v720, %v723
    %v725 = vmul.f32 %v721, %v723
    %v726 = vadd.f32 %v718, %v724
    %v727 = vadd.f32 %v719, %v725
    %v728 = vld [vmem:[#allocation2 + $0x70] sm:$0xff]
    %v729 = vld [vmem:[#allocation2 + $0x78] sm:$0xff]
    %s730 = sld [smem:[#allocation8 + $0x7]]
    %v731 = vstv %s730
    %v732 = vmul.f32 %v728, %v731
    %v733 = vmul.f32 %v729, %v731
    %v734 = vadd.f32 %v726, %v732
    %v735 = vadd.f32 %v727, %v733
    %s736 = sld [smem:[#allocation9 + $0x1]]
    %v737 = vstv %s736
    %v738 = vadd.f32 %v734, %v737
    %v739 = vadd.f32 %v735, %v737
    %v741 = vsel %vm114, %v738, 0
    %v744 = vsel %vm114, %v739, 0
    %746 = vmatprep.subr.mxu0 0.0
    %747 = vmatpush1.msra.mxu0 %v78
    %748 = vmatprep.subr.mxu0 0.0
    %749 = vmatpush1.msra.mxu0 %v79
    %750 = vmatprep.subr.mxu0 0.0
    %751 = vmatpush1.msra.mxu0 0.0
    %752 = vmatprep.subr.mxu0 0.0
    %753 = vmatpush1.msra.mxu0 0.0
    %754 = vmatprep.subr.mxu0 0.0
    %755 = vmatpush1.msra.mxu0 0.0
    %756 = vmatprep.subr.mxu0 0.0
    %757 = vmatpush1.msra.mxu0 0.0
    %758 = vmatprep.subr.mxu0 0.0
    %759 = vmatpush1.msra.mxu0 0.0
    %760 = vmatprep.subr.mxu0 0.0
    %761 = vmatpush1.msra.mxu0 0.0
    %762 = vmatprep.subr.mxu0 0.0
    %763 = vmatpush1.msra.mxu0 0.0
    %764 = vmatprep.subr.mxu0 0.0
    %765 = vmatpush1.msra.mxu0 0.0
    %766 = vmatprep.subr.mxu0 0.0
    %767 = vmatpush1.msra.mxu0 0.0
    %768 = vmatprep.subr.mxu0 0.0
    %769 = vmatpush1.msra.mxu0 0.0
    %770 = vmatprep.subr.mxu0 0.0
    %771 = vmatpush1.msra.mxu0 0.0
    %772 = vmatprep.subr.mxu0 0.0
    %773 = vmatpush1.msra.mxu0 0.0
    %774 = vmatprep.subr.mxu0 0.0
    %775 = vmatpush1.msra.mxu0 0.0
    %776 = vmatprep.subr.mxu0 0.0
    %777 = vmatpush1.msra.mxu0 0.0
    %778 = vmatprep.subr.mxu0 0.0
    %779 = vmatpush1.msra.mxu0 0.0
    %780 = vmatprep.subr.mxu0 0.0
    %781 = vmatpush1.msra.mxu0 0.0
    %782 = vmatprep.subr.mxu0 0.0
    %783 = vmatpush1.msra.mxu0 0.0
    %784 = vmatprep.subr.mxu0 0.0
    %785 = vmatpush1.msra.mxu0 0.0
    %786 = vmatprep.subr.mxu0 0.0
    %787 = vmatpush1.msra.mxu0 0.0
    %788 = vmatprep.subr.mxu0 0.0
    %789 = vmatpush1.msra.mxu0 0.0
    %790 = vmatprep.subr.mxu0 0.0
    %791 = vmatpush1.msra.mxu0 0.0
    %792 = vmatprep.subr.mxu0 0.0
    %793 = vmatpush1.msra.mxu0 0.0
    %794 = vmatprep.subr.mxu0 0.0
    %795 = vmatpush1.msra.mxu0 0.0
    %796 = vmatprep.subr.mxu0 0.0
    %797 = vmatpush1.msra.mxu0 0.0
    %798 = vmatprep.subr.mxu0 0.0
    %799 = vmatpush1.msra.mxu0 0.0
    %800 = vmatprep.subr.mxu0 0.0
    %801 = vmatpush1.msra.mxu0 0.0
    %802 = vmatprep.subr.mxu0 0.0
    %803 = vmatpush1.msra.mxu0 0.0
    %804 = vmatprep.subr.mxu0 0.0
    %805 = vmatpush1.msra.mxu0 0.0
    %806 = vmatprep.subr.mxu0 0.0
    %807 = vmatpush1.msra.mxu0 0.0
    %808 = vmatprep.subr.mxu0 0.0
    %809 = vmatpush1.msra.mxu0 0.0
    %810 = vmatprep.mubr.f32.mxu0 0.0
    %811 = vmatmul.mubr.f32.gmra.mrb[0].mxu0 %v741
    %v812 = vpop.f32.mrb[0].mxu0
    %v813 = vadd.f32 0.0, %v812
    %v814 = vpop.f32.mrb[0].mxu0
    %815 = vmatprep.mubr.f32.mxu0 0.0
    %816 = vmatmul.mubr.f32.gmra.mrb[0].mxu0 %v744
    %v817 = vpop.f32.mrb[0].mxu0
    %v818 = vadd.f32 0.0, %v817
    %v819 = vpop.f32.mrb[0].mxu0
    %820 = vdwg.mxu0
    %821 = vmatprep.subr.mxu0 0.0
    %822 = vmatpush1.msra.mxu0 %v813
    %823 = vmatprep.subr.mxu0 0.0
    %824 = vmatpush1.msra.mxu0 %v818
    %825 = vmatprep.subr.mxu0 0.0
    %826 = vmatpush1.msra.mxu0 0.0
    %827 = vmatprep.subr.mxu0 0.0
    %828 = vmatpush1.msra.mxu0 0.0
    %829 = vmatprep.subr.mxu0 0.0
    %830 = vmatpush1.msra.mxu0 0.0
    %831 = vmatprep.subr.mxu0 0.0
    %832 = vmatpush1.msra.mxu0 0.0
    %833 = vmatprep.subr.mxu0 0.0
    %834 = vmatpush1.msra.mxu0 0.0
    %835 = vmatprep.subr.mxu0 0.0
    %836 = vmatpush1.msra.mxu0 0.0
    %837 = vmatprep.subr.mxu0 0.0
    %838 = vmatpush1.msra.mxu0 0.0
    %839 = vmatprep.subr.mxu0 0.0
    %840 = vmatpush1.msra.mxu0 0.0
    %841 = vmatprep.subr.mxu0 0.0
    %842 = vmatpush1.msra.mxu0 0.0
    %843 = vmatprep.subr.mxu0 0.0
    %844 = vmatpush1.msra.mxu0 0.0
    %845 = vmatprep.subr.mxu0 0.0
    %846 = vmatpush1.msra.mxu0 0.0
    %847 = vmatprep.subr.mxu0 0.0
    %848 = vmatpush1.msra.mxu0 0.0
    %849 = vmatprep.subr.mxu0 0.0
    %850 = vmatpush1.msra.mxu0 0.0
    %851 = vmatprep.subr.mxu0 0.0
    %852 = vmatpush1.msra.mxu0 0.0
    %853 = vmatprep.subr.mxu0 0.0
    %854 = vmatpush1.msra.mxu0 0.0
    %855 = vmatprep.subr.mxu0 0.0
    %856 = vmatpush1.msra.mxu0 0.0
    %857 = vmatprep.subr.mxu0 0.0
    %858 = vmatpush1.msra.mxu0 0.0
    %859 = vmatprep.subr.mxu0 0.0
    %860 = vmatpush1.msra.mxu0 0.0
    %861 = vmatprep.subr.mxu0 0.0
    %862 = vmatpush1.msra.mxu0 0.0
    %863 = vmatprep.subr.mxu0 0.0
    %864 = vmatpush1.msra.mxu0 0.0
    %865 = vmatprep.subr.mxu0 0.0
    %866 = vmatpush1.msra.mxu0 0.0
    %867 = vmatprep.subr.mxu0 0.0
    %868 = vmatpush1.msra.mxu0 0.0
    %869 = vmatprep.subr.mxu0 0.0
    %870 = vmatpush1.msra.mxu0 0.0
    %871 = vmatprep.subr.mxu0 0.0
    %872 = vmatpush1.msra.mxu0 0.0
    %873 = vmatprep.subr.mxu0 0.0
    %874 = vmatpush1.msra.mxu0 0.0
    %875 = vmatprep.subr.mxu0 0.0
    %876 = vmatpush1.msra.mxu0 0.0
    %877 = vmatprep.subr.mxu0 0.0
    %878 = vmatpush1.msra.mxu0 0.0
    %879 = vmatprep.subr.mxu0 0.0
    %880 = vmatpush1.msra.mxu0 0.0
    %881 = vmatprep.subr.mxu0 0.0
    %882 = vmatpush1.msra.mxu0 0.0
    %883 = vmatprep.subr.mxu0 0.0
    %884 = vmatpush1.msra.mxu0 0.0
    %885 = vmatprep.mubr.f32.mxu0 0.0
    %886 = vmatmul.mubr.f32.gmra.mrb[0].mxu0 %v197
    %v887 = vpop.f32.mrb[0].mxu0
    %v888 = vadd.f32 0.0, %v887
    %v889 = vpop.f32.mrb[0].mxu0
    %890 = vmatprep.mubr.f32.mxu0 0.0
    %891 = vmatmul.mubr.f32.gmra.mrb[0].mxu0 %v200
    %v892 = vpop.f32.mrb[0].mxu0
    %v893 = vadd.f32 0.0, %v892
    %v894 = vpop.f32.mrb[0].mxu0
    %895 = vmatprep.mubr.f32.mxu0 0.0
    %896 = vmatmul.mubr.f32.gmra.mrb[0].mxu0 %v203
    %v897 = vpop.f32.mrb[0].mxu0
    %v898 = vadd.f32 0.0, %v897
    %v899 = vpop.f32.mrb[0].mxu0
    %900 = vmatprep.mubr.f32.mxu0 0.0
    %901 = vmatmul.mubr.f32.gmra.mrb[0].mxu0 %v206
    %v902 = vpop.f32.mrb[0].mxu0
    %v903 = vadd.f32 0.0, %v902
    %v904 = vpop.f32.mrb[0].mxu0
    %905 = vdwg.mxu0
    %906 = vst.msk [vmem:[#allocation11 + $0x60] sm:$0xff] %vm293, %v888
    %907 = vst.msk [vmem:[#allocation11 + $0x68] sm:$0xff] %vm293, %v893
    %908 = vst.msk [vmem:[#allocation11 + $0x70] sm:$0xff] %vm293, %v898
    %909 = vst.msk [vmem:[#allocation11 + $0x78] sm:$0xff] %vm293, %v903
    // Predicated region
    $region38: #{unet_dsv3.1} parent=1 // pred_check
      _
    $region39: #{unet_dsv3.1} parent=1 // pred_check_branch
      %911 = sbr.rel (0) target = $region41
    $region40: #{unet_dsv3.1} parent=1 // pred_region
      %s913 = ssub.s32 2048, 2048
      %914 = vsyncadd [#allocation4], %s913
      %s915 = sshll.u32 [#allocation11], 4
      %s916 = int_to_ptr.vmem [resolvable:$true] %s915
      %921 = dma.vmem_to_hbm [thread:$0]  %s916, 2048, %s5, [#allocation4], 128, 128, 8
    $region41: #{unet_dsv3.1} parent=1 // pred_fallthru
      _
    // Predicated region
    $region42: #{unet_dsv3.1} parent=1 // pred_check
      _
    $region43: #{unet_dsv3.1} parent=1 // pred_check_branch
      %923 = sbr.rel (0) target = $region45
    $region44: #{unet_dsv3.1} parent=1 // pred_region
      %924 = dma.done [#allocation4], 2048
    $region45: #{unet_dsv3.1} parent=1 // pred_fallthru
      _
    %925 = vsyncpa [#allocation3], 1
    %926 = vsyncpa [#allocation7], 1
    %927 = vsyncpa [#allocation4], 1
    %928 = vsyncpa [#allocation5], 1
    %929 = vsyncpa [#allocation10], 1

</llo_original>
